<compile_context>
chip_gen: v5e
topology: v5e:2x2
jax: 0.10.0
libtpu: 0.0.40
codegen_flags: <defaults>
</compile_context>

<pallas_src>
import numpy as np
import jax
import jax.numpy as jnp
from jax.experimental import pallas as pl
from jax.experimental.pallas import tpu as pltpu


def _round_up(x, m):
    return ((x + m - 1) // m) * m


def _sublane_multiple(dtype):
    # f32 -> 8, bf16 -> 16, int8/fp8 -> 32 (packed sublanes).
    return max(8, 32 // jnp.dtype(dtype).itemsize)


# ---------------------------------------------------------------------------
# Kernels
# ---------------------------------------------------------------------------
def _linear_kernel_acc_out(x_ref, wt_ref, b_ref, o_ref):
    # f32 output: accumulate directly into the resident output block.
    # x_ref: (tm, tk), wt_ref: (tk, tn), b_ref: (1, tn) f32, o_ref: (tm, tn) f32
    k = pl.program_id(2)

    @pl.when(k == 0)
    def _():
        o_ref[...] = jnp.broadcast_to(b_ref[...], o_ref.shape)

    o_ref[...] += jnp.dot(
        x_ref[...], wt_ref[...], preferred_element_type=jnp.float32
    )


def _linear_kernel_scratch(x_ref, wt_ref, b_ref, o_ref, acc_ref):
    # Narrow output dtype: f32 VMEM accumulator, single downcast at the end.
    k = pl.program_id(2)

    @pl.when(k == 0)
    def _():
        acc_ref[...] = jnp.zeros_like(acc_ref)

    acc_ref[...] += jnp.dot(
        x_ref[...], wt_ref[...], preferred_element_type=jnp.float32
    )

    @pl.when(k == pl.num_programs(2) - 1)
    def _():
        o_ref[...] = (acc_ref[...] + b_ref[...]).astype(o_ref.dtype)


# ---------------------------------------------------------------------------
# Weight preparation (run ONCE per weight, i.e. at module init)
# ---------------------------------------------------------------------------
def prepare_linear_params(w, *, tn=1024, tk=1024, compute_dtype=jnp.bfloat16):
    """Split the bias column, transpose the weight to a lane-dense (K, N)
    layout, cast to the compute dtype and pad to tile boundaries.  The cost of
    this is amortized across all forward calls with the same weight."""
    Fout, Fin_p1 = w.shape
    Fin = Fin_p1 - 1
    K, N = Fin, Fout

    w_t = jnp.transpose(w[:, :Fin])                     # (K, N)
    bias = w[:, Fin].reshape(1, Fout).astype(jnp.float32)

    # Tiles are lane (128) multiples; clamp to the (rounded) problem size.
    tn = min(_round_up(tn, 128), _round_up(N, 128))
    tk = min(_round_up(tk, 128), _round_up(K, 128))
    Kp = _round_up(K, tk)
    Np = _round_up(N, tn)

    if compute_dtype is not None:
        w_t = w_t.astype(compute_dtype)
    if (Kp, Np) != (K, N):
        w_t = jnp.pad(w_t, ((0, Kp - K), (0, Np - N)))
    if Np != N:
        bias = jnp.pad(bias, ((0, 0), (0, Np - N)))

    return dict(w_t=w_t, bias=bias, K=K, N=N, Kp=Kp, Np=Np, tn=tn, tk=tk,
                compute_dtype=compute_dtype)


# ---------------------------------------------------------------------------
# Forward pass
# ---------------------------------------------------------------------------
def linear_forward_prepared(x, params, *, tm=512, out_dtype=None):
    """Forward with pre-prepared weights.  x: (batch, in_features) or
    (in_features,).  Returns (batch, out_features) (the PyTorch module also
    returns a 2-D (1, out) result for 1-D input, since it views x as (1,-1))."""
    if x.ndim == 1:
        x = x.reshape(1, -1)

    # Capture output dtype BEFORE any compute-dtype cast.
    out_dtype = jnp.dtype(x.dtype) if out_dtype is None else jnp.dtype(out_dtype)

    M, Fin = x.shape
    K, N = params["K"], params["N"]
    Kp, Np = params["Kp"], params["Np"]
    tn, tk = params["tn"], params["tk"]
    assert Fin == K, f"in_features mismatch: {Fin} vs {K}"

    cd = params["compute_dtype"]
    if cd is not None:
        x = x.astype(cd)

    # Sublane multiple depends on the (possibly packed) compute dtype.
    sub = _sublane_multiple(x.dtype)
    tm = _round_up(max(tm, sub), sub)
    Msub = _round_up(M, sub)
    if Msub <= tm:
        # Small batch: one M tile -> the weight matrix streams from HBM once.
        tm = Msub
    Mp = _round_up(M, tm)

    if (Mp, Kp) != (M, K):
        x = jnp.pad(x, ((0, Mp - M), (0, Kp - K)))

    grid = (Mp // tm, Np // tn, Kp // tk)

    f32_out = out_dtype == jnp.dtype(jnp.float32)
    kernel = _linear_kernel_acc_out if f32_out else _linear_kernel_scratch
    scratch_shapes = [] if f32_out else [pltpu.VMEM((tm, tn), jnp.float32)]

    # VMEM budget: double-buffered input/weight/output tiles (+ acc scratch).
    x_b = jnp.dtype(x.dtype).itemsize
    w_b = jnp.dtype(params["w_t"].dtype).itemsize
    o_b = out_dtype.itemsize
    need = (2 * tm * tk * x_b + 2 * tk * tn * w_b + 2 * tm * tn * o_b
            + 2 * tn * 4 + (0 if f32_out else tm * tn * 4))
    # Cap at 64 MiB so the same config stays legal on v7x (64 MiB VMEM/TC);
    # v5e/v6e (128 MiB) could go higher with even larger tiles.
    vmem_limit = int(min(max(32 << 20, int(need * 1.5)), 64 << 20))

    cost = pl.CostEstimate(
        flops=2 * M * K * N,
        transcendentals=0,
        bytes_accessed=M * K * x_b + K * N * w_b + M * N * o_b + N * 4,
    )

    out_p = pl.pallas_call(
        kernel,
        out_shape=jax.ShapeDtypeStruct((Mp, Np), out_dtype),
        grid_spec=pltpu.PrefetchScalarGridSpec(
            num_scalar_prefetch=0,
            grid=grid,
            in_specs=[
                pl.BlockSpec((tm, tk), lambda i, j, k: (i, k)),
                pl.BlockSpec((tk, tn), lambda i, j, k: (k, j)),
                pl.BlockSpec((1, tn), lambda i, j, k: (0, j)),
            ],
            out_specs=pl.BlockSpec((tm, tn), lambda i, j, k: (i, j)),
            scratch_shapes=scratch_shapes,
        ),
        compiler_params=pltpu.CompilerParams(
            dimension_semantics=("parallel", "parallel", "arbitrary"),
            vmem_limit_bytes=vmem_limit,
        ),
        cost_estimate=cost,
    )(x, params["w_t"], params["bias"])

    if (Mp, Np) != (M, N):
        out_p = out_p[:M, :N]
    return out_p


def linear_forward(x, w, *, tm=512, tn=1024, tk=1024,
                   compute_dtype=jnp.bfloat16, out_dtype=None):
    """Convenience one-shot wrapper (prepares the weight every call).  For
    repeated calls, cache prepare_linear_params(w) and use
    linear_forward_prepared()."""
    params = prepare_linear_params(w, tn=tn, tk=tk, compute_dtype=compute_dtype)
    return linear_forward_prepared(x, params, tm=tm, out_dtype=out_dtype)


if __name__ == "__main__":
    # Small shapes consistent with the module: x (batch, in_features),
    # w (out_features, in_features + 1).
    batch, in_features, out_features = 64, 384, 256

    key = jax.random.PRNGKey(0)
    kx, kw = jax.random.split(key)

    # Deterministic param init mirroring Linear.__init__:
    # w = randn(out, in+1) * sqrt(2 / (in + out + 1))
    w = jax.random.normal(
        kw, (out_features, in_features + 1), dtype=jnp.float32
    ) * np.sqrt(2.0 / (in_features + out_features + 1))
    x = jax.random.normal(kx, (batch, in_features), dtype=jnp.float32)

    # Float64 reference with identical semantics to the PyTorch forward:
    # concat([x, ones]) @ w.T == x @ w[:, :-1].T + w[:, -1]
    x64 = np.asarray(x, dtype=np.float64)
    w64 = np.asarray(w, dtype=np.float64)
    ref = x64 @ w64[:, :-1].T + w64[:, -1][None, :]

    # Path 1: default bf16-compute path with cached (prepared) weights.
    # Single-tile grid here; f32 accumulation + f32 output preserved.
    params_bf16 = prepare_linear_params(w)                 # once per weight
    out_bf16 = jax.block_until_ready(linear_forward_prepared(x, params_bf16))
    assert out_bf16.shape == (batch, out_features)
    assert out_bf16.dtype == jnp.float32                   # out dtype preserved
    np.testing.assert_allclose(
        np.asarray(out_bf16, dtype=np.float64), ref, rtol=5e-2, atol=5e-2
    )

    # Path 2: strict-f32 operands with deliberately small tiles so the demo
    # exercises the full multi-tile M/N/K pipeline: grid = (2, 2, 3).
    params_f32 = prepare_linear_params(w, tn=128, tk=128, compute_dtype=None)
    out_f32 = jax.block_until_ready(
        linear_forward_prepared(x, params_f32, tm=32)
    )
    assert out_f32.shape == (batch, out_features)
    np.testing.assert_allclose(
        np.asarray(out_f32, dtype=np.float64), ref, rtol=1e-4, atol=1e-4
    )

    # Path 3: convenience wrapper + 1-D input (module views it as (1, -1)).
    out_1d = jax.block_until_ready(linear_forward(x[0], w))
    assert out_1d.shape == (1, out_features)
    np.testing.assert_allclose(
        np.asarray(out_1d[0], dtype=np.float64), ref[0], rtol=5e-2, atol=5e-2
    )

    # TODO(synk): backward()/update() of the module are training-time methods and
    # are intentionally not part of this forward-pass kernel.
    print("KERNEL_OK")
</pallas_src>

<mosaic_0001>
module attributes {stable_mosaic.version = 11 : i64} {
  func.func @_linear_kernel_acc_out(%arg0: i32, %arg1: i32, %arg2: i32, %arg3: memref<64x384xbf16, #tpu.memory_space<vmem>>, %arg4: memref<384x256xbf16, #tpu.memory_space<vmem>>, %arg5: memref<1x256xf32, #tpu.memory_space<vmem>>, %arg6: memref<64x256xf32, #tpu.memory_space<vmem>>) attributes {dimension_semantics = [#tpu.dimension_semantics<parallel>, #tpu.dimension_semantics<parallel>, #tpu.dimension_semantics<arbitrary>], iteration_bounds = array<i64: 1, 1, 1>, scalar_prefetch = 0 : i64, scratch_operands = 0 : i64, tpu.core_type = #tpu.core_type<tc>, window_params = [{transform_indices = @transform_0, window_bounds = array<i64: 64, 384>}, {transform_indices = @transform_1, window_bounds = array<i64: 384, 256>}, {transform_indices = @transform_2, window_bounds = array<i64: 1, 256>}, {transform_indices = @transform_3, window_bounds = array<i64: 64, 256>}]} {
    %c0_i32 = arith.constant 0 : i32
    %0 = arith.cmpi eq, %arg2, %c0_i32 : i32
    %1 = arith.extui %0 : i1 to i32
    %c0_i32_0 = arith.constant 0 : i32
    %2 = arith.cmpi ne, %1, %c0_i32_0 : i32
    scf.if %2 {
      %c0_8 = arith.constant 0 : index
      %c0_9 = arith.constant 0 : index
      %9 = vector.load %arg5[%c0_8, %c0_9] : memref<1x256xf32, #tpu.memory_space<vmem>>, vector<1x256xf32>
      %10 = vector.shape_cast %9 : vector<1x256xf32> to vector<1x256xf32>
      %11 = vector.broadcast %10 : vector<1x256xf32> to vector<64x256xf32>
      %c0_10 = arith.constant 0 : index
      %c0_11 = arith.constant 0 : index
      %12 = vector.load %arg6[%c0_10, %c0_11] : memref<64x256xf32, #tpu.memory_space<vmem>>, vector<64x256xf32>
      tpu.vector_store %arg6[%c0_10, %c0_11], %11 {strides = array<i32>} : memref<64x256xf32, #tpu.memory_space<vmem>>, vector<64x256xf32>,
    } else {
    }
    %c0 = arith.constant 0 : index
    %c0_1 = arith.constant 0 : index
    %3 = vector.load %arg6[%c0, %c0_1] : memref<64x256xf32, #tpu.memory_space<vmem>>, vector<64x256xf32>
    %c0_2 = arith.constant 0 : index
    %c0_3 = arith.constant 0 : index
    %4 = vector.load %arg3[%c0_2, %c0_3] : memref<64x384xbf16, #tpu.memory_space<vmem>>, vector<64x384xbf16>
    %c0_4 = arith.constant 0 : index
    %c0_5 = arith.constant 0 : index
    %5 = vector.load %arg4[%c0_4, %c0_5] : memref<384x256xbf16, #tpu.memory_space<vmem>>, vector<384x256xbf16>
    %cst = arith.constant dense<0.000000e+00> : vector<64x256xf32>
    %6 = tpu.matmul %4, %5, %cst {dimension_numbers = #tpu.dot_dimension_numbers<[1], [0], [0], [1], [0, 0, 1, 1], [], []>} : vector<64x384xbf16>, vector<384x256xbf16>, vector<64x256xf32> -> vector<64x256xf32>
    %7 = arith.addf %3, %6 : vector<64x256xf32>
    %c0_6 = arith.constant 0 : index
    %c0_7 = arith.constant 0 : index
    %8 = vector.load %arg6[%c0_6, %c0_7] : memref<64x256xf32, #tpu.memory_space<vmem>>, vector<64x256xf32>
    tpu.vector_store %arg6[%c0_6, %c0_7], %7 {strides = array<i32>} : memref<64x256xf32, #tpu.memory_space<vmem>>, vector<64x256xf32>,
    return
  }
  func.func @transform_0(%arg0: i32, %arg1: i32, %arg2: i32) -> (i32, i32) {
    %c0_i32 = arith.constant 0 : i32
    return %arg0, %arg2 : i32, i32
  }
  func.func @transform_1(%arg0: i32, %arg1: i32, %arg2: i32) -> (i32, i32) {
    %c0_i32 = arith.constant 0 : i32
    return %arg2, %arg1 : i32, i32
  }
  func.func @transform_2(%arg0: i32, %arg1: i32, %arg2: i32) -> (i32, i32) {
    %c0_i32 = arith.constant 0 : i32
    %c0_i32_0 = arith.constant 0 : i32
    return %c0_i32, %arg1 : i32, i32
  }
  func.func @transform_3(%arg0: i32, %arg1: i32, %arg2: i32) -> (i32, i32) {
    %c0_i32 = arith.constant 0 : i32
    return %arg0, %arg1 : i32, i32
  }
}

</mosaic_0001>

<llo_original>
// kernel: tpu_custom_call.1
$region0: #{tpu_custom_call.1}
  #allocation0 [shape = 'u32[]', space=smem, size = 0x4, offset = 0x4, fixed_abs, tag = 'smem constant byte address 0x4 - core index']
  #allocation1 [shape = 'u32[72,128]{1,0:T(1,128)}', space=vmem, size = 0x9000, scoped, tag = 'internal scratch']
  %s0 = inlined_call_operand.hbm [shape: bf16[64,384], index: 0, kind: input, shape index: {}]
  %s1 = inlined_call_operand.hbm [shape: bf16[384,256], index: 1, kind: input, shape index: {}]
  %s2 = inlined_call_operand.hbm [shape: f32[1,256], index: 2, kind: input, shape index: {}]
  %s3 = inlined_call_operand.hbm [shape: f32[64,256], index: 3, kind: output, shape index: {}]
  %s4 = sld [smem:[#allocation0]]
  $region38: #{tpu_custom_call.1} parent=0
    _
  %s6 = ssub.s32 1, %s4
  %s7 = scalar_select 0, %s6, %s4
  $region1: #{tpu_custom_call.1} parent=0
    #allocation2 [shape = 'u8[49152]{0}', space=vmem, size = 0xc000, scoped, tag = 'input window, operand 0, single buffered']
    #allocation3 [shape = 's32[1]{0}', space=sflag, size = 0x4, scoped, tag = 'scoped memory for tpu_custom_call.1']
    #allocation4 [shape = 's32[1]{0}', space=sflag, size = 0x4, scoped, tag = 'scoped memory for tpu_custom_call.1']
    #allocation5 [shape = 'u8[196608]{0}', space=vmem, size = 0x30000, scoped, tag = 'input window, operand 1, single buffered']
    #allocation6 [shape = 's32[1]{0}', space=sflag, size = 0x4, scoped, tag = 'scoped memory for tpu_custom_call.1']
    #allocation7 [shape = 'u8[1024]{0}', space=vmem, size = 0x400, scoped, tag = 'input window, operand 2, single buffered']
    #allocation8 [shape = 'u8[65536]{0}', space=vmem, size = 0x10000, scoped, tag = 'output window, operand 0, single buffered']
    %8 = vsyncpa [#allocation3], 0
    %9 = vsyncpa [#allocation6], 0
    %10 = vsyncpa [#allocation4], 0
    // Predicated region
    $region2: #{tpu_custom_call.1} parent=1 // pred_check
      _
    $region3: #{tpu_custom_call.1} parent=1 // pred_check_branch
      %12 = sbr.rel (0) target = $region5
    $region4: #{tpu_custom_call.1} parent=1 // pred_region
      %14 = vsyncadd [#allocation3], 0
      %s15 = sshll.u32 %s0, 4
      %s16 = int_to_ptr.hbm [resolvable:$true] %s15
      %s17 = sshll.u32 [#allocation2], 4
      %s18 = int_to_ptr.vmem [resolvable:$true] %s17
      %23 = dma.hbm_to_vmem [thread:$0]  %s16, 1536, %s18, [#allocation3], 192, 192, 12
    $region5: #{tpu_custom_call.1} parent=1 // pred_fallthru
      _
    // Predicated region
    $region6: #{tpu_custom_call.1} parent=1 // pred_check
      _
    $region7: #{tpu_custom_call.1} parent=1 // pred_check_branch
      %25 = sbr.rel (0) target = $region9
    $region8: #{tpu_custom_call.1} parent=1 // pred_region
      %27 = vsyncadd [#allocation6], 0
      %s28 = sshll.u32 %s1, 4
      %s29 = int_to_ptr.hbm [resolvable:$true] %s28
      %s30 = sshll.u32 [#allocation5], 4
      %s31 = int_to_ptr.vmem [resolvable:$true] %s30
      %36 = dma.hbm_to_vmem [thread:$0]  %s29, 6144, %s31, [#allocation6], 128, 128, 8
    $region9: #{tpu_custom_call.1} parent=1 // pred_fallthru
      _
    // Predicated region
    $region10: #{tpu_custom_call.1} parent=1 // pred_check
      _
    $region11: #{tpu_custom_call.1} parent=1 // pred_check_branch
      %38 = sbr.rel (0) target = $region13
    $region12: #{tpu_custom_call.1} parent=1 // pred_region
      %40 = vsyncadd [#allocation6], 0
      %s42 = sshll.u32 %s2, 4
      %s43 = int_to_ptr.hbm [resolvable:$true] %s42
      %s44 = sshll.u32 [#allocation7], 4
      %s45 = int_to_ptr.vmem [resolvable:$true] %s44
      %47 = dma.hbm_to_vmem [thread:$0]  %s43, 32, %s45, [#allocation6]
    $region13: #{tpu_custom_call.1} parent=1 // pred_fallthru
      _
    // Predicated region
    $region14: #{tpu_custom_call.1} parent=1 // pred_check
      _
    $region15: #{tpu_custom_call.1} parent=1 // pred_check_branch
      %49 = sbr.rel (0) target = $region17
    $region16: #{tpu_custom_call.1} parent=1 // pred_region
      %51 = dma.done [#allocation3], 1536
    $region17: #{tpu_custom_call.1} parent=1 // pred_fallthru
      _
    // Predicated region
    $region18: #{tpu_custom_call.1} parent=1 // pred_check
      _
    $region19: #{tpu_custom_call.1} parent=1 // pred_check_branch
      %53 = sbr.rel (0) target = $region21
    $region20: #{tpu_custom_call.1} parent=1 // pred_region
      %55 = dma.done [#allocation6], 6144
    $region21: #{tpu_custom_call.1} parent=1 // pred_fallthru
      _
    // Predicated region
    $region22: #{tpu_custom_call.1} parent=1 // pred_check
      _
    $region23: #{tpu_custom_call.1} parent=1 // pred_check_branch
      %57 = sbr.rel (0) target = $region25
    $region24: #{tpu_custom_call.1} parent=1 // pred_region
      %59 = dma.done [#allocation6], 32
    $region25: #{tpu_custom_call.1} parent=1 // pred_fallthru
      _
    %p60 = scmp.eq.s32.totalorder 0, 0
    // Predicated region
    $region26: #{tpu_custom_call.1} parent=1 // pred_check
      %p61 = pneg %p60
    $region27: #{tpu_custom_call.1} parent=1 // pred_check_branch
      %63 = sbr.rel (%p61) target = $region29
    $region28: #{tpu_custom_call.1} parent=1 // pred_region
      %v64 = vld [vmem:[#allocation7] sm:$0x3]
      %v66 = vperm.slane %v64, 0
      %v67 = vperm.slane %v64, 1
      %70 = vst [vmem:[#allocation8] sm:$0xff] %v66
      %71 = vst [vmem:[#allocation8 + $0x8] sm:$0xff] %v67
      %72 = vst [vmem:[#allocation8 + $0x10] sm:$0xff] %v66
      %73 = vst [vmem:[#allocation8 + $0x18] sm:$0xff] %v67
      %74 = vst [vmem:[#allocation8 + $0x20] sm:$0xff] %v66
      %75 = vst [vmem:[#allocation8 + $0x28] sm:$0xff] %v67
      %76 = vst [vmem:[#allocation8 + $0x30] sm:$0xff] %v66
      %77 = vst [vmem:[#allocation8 + $0x38] sm:$0xff] %v67
      %78 = vst [vmem:[#allocation8 + $0x40] sm:$0xff] %v66
      %79 = vst [vmem:[#allocation8 + $0x48] sm:$0xff] %v67
      %80 = vst [vmem:[#allocation8 + $0x50] sm:$0xff] %v66
      %81 = vst [vmem:[#allocation8 + $0x58] sm:$0xff] %v67
      %82 = vst [vmem:[#allocation8 + $0x60] sm:$0xff] %v66
      %83 = vst [vmem:[#allocation8 + $0x68] sm:$0xff] %v67
      %84 = vst [vmem:[#allocation8 + $0x70] sm:$0xff] %v66
      %85 = vst [vmem:[#allocation8 + $0x78] sm:$0xff] %v67
    $region29: #{tpu_custom_call.1} parent=1 // pred_fallthru
      _
    %v86 = vld [vmem:[#allocation8] sm:$0xff]
    %v87 = vld [vmem:[#allocation8 + $0x8] sm:$0xff]
    %v88 = vld [vmem:[#allocation8 + $0x10] sm:$0xff]
    %v89 = vld [vmem:[#allocation8 + $0x18] sm:$0xff]
    %v90 = vld [vmem:[#allocation8 + $0x20] sm:$0xff]
    %v91 = vld [vmem:[#allocation8 + $0x28] sm:$0xff]
    %v92 = vld [vmem:[#allocation8 + $0x30] sm:$0xff]
    %v93 = vld [vmem:[#allocation8 + $0x38] sm:$0xff]
    %v94 = vld [vmem:[#allocation8 + $0x40] sm:$0xff]
    %v95 = vld [vmem:[#allocation8 + $0x48] sm:$0xff]
    %v96 = vld [vmem:[#allocation8 + $0x50] sm:$0xff]
    %v97 = vld [vmem:[#allocation8 + $0x58] sm:$0xff]
    %v98 = vld [vmem:[#allocation8 + $0x60] sm:$0xff]
    %v99 = vld [vmem:[#allocation8 + $0x68] sm:$0xff]
    %v100 = vld [vmem:[#allocation8 + $0x70] sm:$0xff]
    %v101 = vld [vmem:[#allocation8 + $0x78] sm:$0xff]
    %v102 = vld [vmem:[#allocation2] sm:$0xff]
    %v103 = vld [vmem:[#allocation2 + $0x8] sm:$0xf]
    %v104 = vld [vmem:[#allocation2 + $0xc] sm:$0xff]
    %v105 = vld [vmem:[#allocation2 + $0x14] sm:$0xf]
    %v106 = vld [vmem:[#allocation2 + $0x18] sm:$0xff]
    %v107 = vld [vmem:[#allocation2 + $0x20] sm:$0xf]
    %v108 = vld [vmem:[#allocation2 + $0x24] sm:$0xff]
    %v109 = vld [vmem:[#allocation2 + $0x2c] sm:$0xf]
    %v110 = vld [vmem:[#allocation2 + $0x30] sm:$0xff]
    %v111 = vld [vmem:[#allocation2 + $0x38] sm:$0xf]
    %v112 = vld [vmem:[#allocation2 + $0x3c] sm:$0xff]
    %v113 = vld [vmem:[#allocation2 + $0x44] sm:$0xf]
    %v114 = vld [vmem:[#allocation2 + $0x48] sm:$0xff]
    %v115 = vld [vmem:[#allocation2 + $0x50] sm:$0xf]
    %v116 = vld [vmem:[#allocation2 + $0x54] sm:$0xff]
    %v117 = vld [vmem:[#allocation2 + $0x5c] sm:$0xf]
    %v118 = vld [vmem:[#allocation5] sm:$0xff]
    %v119 = vld [vmem:[#allocation5 + $0x8] sm:$0xff]
    %v120 = vld [vmem:[#allocation5 + $0x10] sm:$0xff]
    %v121 = vld [vmem:[#allocation5 + $0x18] sm:$0xff]
    %v122 = vld [vmem:[#allocation5 + $0x20] sm:$0xff]
    %v123 = vld [vmem:[#allocation5 + $0x28] sm:$0xff]
    %v124 = vld [vmem:[#allocation5 + $0x30] sm:$0xff]
    %v125 = vld [vmem:[#allocation5 + $0x38] sm:$0xff]
    %v126 = vld [vmem:[#allocation5 + $0x40] sm:$0xff]
    %v127 = vld [vmem:[#allocation5 + $0x48] sm:$0xff]
    %v128 = vld [vmem:[#allocation5 + $0x50] sm:$0xff]
    %v129 = vld [vmem:[#allocation5 + $0x58] sm:$0xff]
    %v130 = vld [vmem:[#allocation5 + $0x60] sm:$0xff]
    %v131 = vld [vmem:[#allocation5 + $0x68] sm:$0xff]
    %v132 = vld [vmem:[#allocation5 + $0x70] sm:$0xff]
    %v133 = vld [vmem:[#allocation5 + $0x78] sm:$0xff]
    %v134 = vld [vmem:[#allocation5 + $0x80] sm:$0xff]
    %v135 = vld [vmem:[#allocation5 + $0x88] sm:$0xff]
    %v136 = vld [vmem:[#allocation5 + $0x90] sm:$0xff]
    %v137 = vld [vmem:[#allocation5 + $0x98] sm:$0xff]
    %v138 = vld [vmem:[#allocation5 + $0xa0] sm:$0xff]
    %v139 = vld [vmem:[#allocation5 + $0xa8] sm:$0xff]
    %v140 = vld [vmem:[#allocation5 + $0xb0] sm:$0xff]
    %v141 = vld [vmem:[#allocation5 + $0xb8] sm:$0xff]
    %v142 = vld [vmem:[#allocation5 + $0xc0] sm:$0xff]
    %v143 = vld [vmem:[#allocation5 + $0xc8] sm:$0xff]
    %v144 = vld [vmem:[#allocation5 + $0xd0] sm:$0xff]
    %v145 = vld [vmem:[#allocation5 + $0xd8] sm:$0xff]
    %v146 = vld [vmem:[#allocation5 + $0xe0] sm:$0xff]
    %v147 = vld [vmem:[#allocation5 + $0xe8] sm:$0xff]
    %v148 = vld [vmem:[#allocation5 + $0xf0] sm:$0xff]
    %v149 = vld [vmem:[#allocation5 + $0xf8] sm:$0xff]
    %v150 = vld [vmem:[#allocation5 + $0x100] sm:$0xff]
    %v151 = vld [vmem:[#allocation5 + $0x108] sm:$0xff]
    %v152 = vld [vmem:[#allocation5 + $0x110] sm:$0xff]
    %v153 = vld [vmem:[#allocation5 + $0x118] sm:$0xff]
    %v154 = vld [vmem:[#allocation5 + $0x120] sm:$0xff]
    %v155 = vld [vmem:[#allocation5 + $0x128] sm:$0xff]
    %v156 = vld [vmem:[#allocation5 + $0x130] sm:$0xff]
    %v157 = vld [vmem:[#allocation5 + $0x138] sm:$0xff]
    %v158 = vld [vmem:[#allocation5 + $0x140] sm:$0xff]
    %v159 = vld [vmem:[#allocation5 + $0x148] sm:$0xff]
    %v160 = vld [vmem:[#allocation5 + $0x150] sm:$0xff]
    %v161 = vld [vmem:[#allocation5 + $0x158] sm:$0xff]
    %v162 = vld [vmem:[#allocation5 + $0x160] sm:$0xff]
    %v163 = vld [vmem:[#allocation5 + $0x168] sm:$0xff]
    %v164 = vld [vmem:[#allocation5 + $0x170] sm:$0xff]
    %v165 = vld [vmem:[#allocation5 + $0x178] sm:$0xff]
    %v182 = vunpack.c.l.b16 %v102
    %v183 = vunpack.c.h.b16 %v102
    %v184 = vunpack.c.l.b16 %v103
    %v185 = vunpack.c.l.b16 %v104
    %v186 = vunpack.c.h.b16 %v104
    %v187 = vunpack.c.l.b16 %v105
    %v188 = vunpack.c.l.b16 %v106
    %v189 = vunpack.c.h.b16 %v106
    %v190 = vunpack.c.l.b16 %v107
    %v191 = vunpack.c.l.b16 %v108
    %v192 = vunpack.c.h.b16 %v108
    %v193 = vunpack.c.l.b16 %v109
    %v194 = vunpack.c.l.b16 %v110
    %v195 = vunpack.c.h.b16 %v110
    %v196 = vunpack.c.l.b16 %v111
    %v197 = vunpack.c.l.b16 %v112
    %v198 = vunpack.c.h.b16 %v112
    %v199 = vunpack.c.l.b16 %v113
    %v200 = vunpack.c.l.b16 %v114
    %v201 = vunpack.c.h.b16 %v114
    %v202 = vunpack.c.l.b16 %v115
    %v203 = vunpack.c.l.b16 %v116
    %v204 = vunpack.c.h.b16 %v116
    %v205 = vunpack.c.l.b16 %v117
    %v206 = vpack.c.b16 %v185, %v182
    %v207 = vpack.c.b16 %v186, %v183
    %v208 = vpack.c.b16 %v187, %v184
    %v209 = vpack.c.b16 %v191, %v188
    %v210 = vpack.c.b16 %v192, %v189
    %v211 = vpack.c.b16 %v193, %v190
    %v212 = vpack.c.b16 %v197, %v194
    %v213 = vpack.c.b16 %v198, %v195
    %v214 = vpack.c.b16 %v199, %v196
    %v215 = vpack.c.b16 %v203, %v200
    %v216 = vpack.c.b16 %v204, %v201
    %v217 = vpack.c.b16 %v205, %v202
    %v278 = vunpack.c.l.b16 %v118
    %v279 = vunpack.c.h.b16 %v118
    %v280 = vunpack.c.l.b16 %v119
    %v281 = vunpack.c.h.b16 %v119
    %v282 = vunpack.c.l.b16 %v120
    %v283 = vunpack.c.h.b16 %v120
    %v284 = vunpack.c.l.b16 %v121
    %v285 = vunpack.c.h.b16 %v121
    %v286 = vunpack.c.l.b16 %v122
    %v287 = vunpack.c.h.b16 %v122
    %v288 = vunpack.c.l.b16 %v123
    %v289 = vunpack.c.h.b16 %v123
    %v290 = vunpack.c.l.b16 %v124
    %v291 = vunpack.c.h.b16 %v124
    %v292 = vunpack.c.l.b16 %v125
    %v293 = vunpack.c.h.b16 %v125
    %v294 = vunpack.c.l.b16 %v126
    %v295 = vunpack.c.h.b16 %v126
    %v296 = vunpack.c.l.b16 %v127
    %v297 = vunpack.c.h.b16 %v127
    %v298 = vunpack.c.l.b16 %v128
    %v299 = vunpack.c.h.b16 %v128
    %v300 = vunpack.c.l.b16 %v129
    %v301 = vunpack.c.h.b16 %v129
    %v302 = vunpack.c.l.b16 %v130
    %v303 = vunpack.c.h.b16 %v130
    %v304 = vunpack.c.l.b16 %v131
    %v305 = vunpack.c.h.b16 %v131
    %v306 = vunpack.c.l.b16 %v132
    %v307 = vunpack.c.h.b16 %v132
    %v308 = vunpack.c.l.b16 %v133
    %v309 = vunpack.c.h.b16 %v133
    %v310 = vunpack.c.l.b16 %v134
    %v311 = vunpack.c.h.b16 %v134
    %v312 = vunpack.c.l.b16 %v135
    %v313 = vunpack.c.h.b16 %v135
    %v314 = vunpack.c.l.b16 %v136
    %v315 = vunpack.c.h.b16 %v136
    %v316 = vunpack.c.l.b16 %v137
    %v317 = vunpack.c.h.b16 %v137
    %v318 = vunpack.c.l.b16 %v138
    %v319 = vunpack.c.h.b16 %v138
    %v320 = vunpack.c.l.b16 %v139
    %v321 = vunpack.c.h.b16 %v139
    %v322 = vunpack.c.l.b16 %v140
    %v323 = vunpack.c.h.b16 %v140
    %v324 = vunpack.c.l.b16 %v141
    %v325 = vunpack.c.h.b16 %v141
    %v326 = vunpack.c.l.b16 %v142
    %v327 = vunpack.c.h.b16 %v142
    %v328 = vunpack.c.l.b16 %v143
    %v329 = vunpack.c.h.b16 %v143
    %v330 = vunpack.c.l.b16 %v144
    %v331 = vunpack.c.h.b16 %v144
    %v332 = vunpack.c.l.b16 %v145
    %v333 = vunpack.c.h.b16 %v145
    %v334 = vunpack.c.l.b16 %v146
    %v335 = vunpack.c.h.b16 %v146
    %v336 = vunpack.c.l.b16 %v147
    %v337 = vunpack.c.h.b16 %v147
    %v338 = vunpack.c.l.b16 %v148
    %v339 = vunpack.c.h.b16 %v148
    %v340 = vunpack.c.l.b16 %v149
    %v341 = vunpack.c.h.b16 %v149
    %v342 = vunpack.c.l.b16 %v150
    %v343 = vunpack.c.h.b16 %v150
    %v344 = vunpack.c.l.b16 %v151
    %v345 = vunpack.c.h.b16 %v151
    %v346 = vunpack.c.l.b16 %v152
    %v347 = vunpack.c.h.b16 %v152
    %v348 = vunpack.c.l.b16 %v153
    %v349 = vunpack.c.h.b16 %v153
    %v350 = vunpack.c.l.b16 %v154
    %v351 = vunpack.c.h.b16 %v154
    %v352 = vunpack.c.l.b16 %v155
    %v353 = vunpack.c.h.b16 %v155
    %v354 = vunpack.c.l.b16 %v156
    %v355 = vunpack.c.h.b16 %v156
    %v356 = vunpack.c.l.b16 %v157
    %v357 = vunpack.c.h.b16 %v157
    %v358 = vunpack.c.l.b16 %v158
    %v359 = vunpack.c.h.b16 %v158
    %v360 = vunpack.c.l.b16 %v159
    %v361 = vunpack.c.h.b16 %v159
    %v362 = vunpack.c.l.b16 %v160
    %v363 = vunpack.c.h.b16 %v160
    %v364 = vunpack.c.l.b16 %v161
    %v365 = vunpack.c.h.b16 %v161
    %v366 = vunpack.c.l.b16 %v162
    %v367 = vunpack.c.h.b16 %v162
    %v368 = vunpack.c.l.b16 %v163
    %v369 = vunpack.c.h.b16 %v163
    %v370 = vunpack.c.l.b16 %v164
    %v371 = vunpack.c.h.b16 %v164
    %v372 = vunpack.c.l.b16 %v165
    %v373 = vunpack.c.h.b16 %v165
    %v374 = vpack.c.b16 %v280, %v278
    %v375 = vpack.c.b16 %v281, %v279
    %v376 = vpack.c.b16 %v284, %v282
    %v377 = vpack.c.b16 %v285, %v283
    %v378 = vpack.c.b16 %v288, %v286
    %v379 = vpack.c.b16 %v289, %v287
    %v380 = vpack.c.b16 %v292, %v290
    %v381 = vpack.c.b16 %v293, %v291
    %v382 = vpack.c.b16 %v296, %v294
    %v383 = vpack.c.b16 %v297, %v295
    %v384 = vpack.c.b16 %v300, %v298
    %v385 = vpack.c.b16 %v301, %v299
    %v386 = vpack.c.b16 %v304, %v302
    %v387 = vpack.c.b16 %v305, %v303
    %v388 = vpack.c.b16 %v308, %v306
    %v389 = vpack.c.b16 %v309, %v307
    %v390 = vpack.c.b16 %v312, %v310
    %v391 = vpack.c.b16 %v313, %v311
    %v392 = vpack.c.b16 %v316, %v314
    %v393 = vpack.c.b16 %v317, %v315
    %v394 = vpack.c.b16 %v320, %v318
    %v395 = vpack.c.b16 %v321, %v319
    %v396 = vpack.c.b16 %v324, %v322
    %v397 = vpack.c.b16 %v325, %v323
    %v398 = vpack.c.b16 %v328, %v326
    %v399 = vpack.c.b16 %v329, %v327
    %v400 = vpack.c.b16 %v332, %v330
    %v401 = vpack.c.b16 %v333, %v331
    %v402 = vpack.c.b16 %v336, %v334
    %v403 = vpack.c.b16 %v337, %v335
    %v404 = vpack.c.b16 %v340, %v338
    %v405 = vpack.c.b16 %v341, %v339
    %v406 = vpack.c.b16 %v344, %v342
    %v407 = vpack.c.b16 %v345, %v343
    %v408 = vpack.c.b16 %v348, %v346
    %v409 = vpack.c.b16 %v349, %v347
    %v410 = vpack.c.b16 %v352, %v350
    %v411 = vpack.c.b16 %v353, %v351
    %v412 = vpack.c.b16 %v356, %v354
    %v413 = vpack.c.b16 %v357, %v355
    %v414 = vpack.c.b16 %v360, %v358
    %v415 = vpack.c.b16 %v361, %v359
    %v416 = vpack.c.b16 %v364, %v362
    %v417 = vpack.c.b16 %v365, %v363
    %v418 = vpack.c.b16 %v368, %v366
    %v419 = vpack.c.b16 %v369, %v367
    %v420 = vpack.c.b16 %v372, %v370
    %v421 = vpack.c.b16 %v373, %v371
    %470 = vmatpush.bf16.msra.mxu0 %v388
    %471 = vmatpush.bf16.msra.mxu0 %v386
    %472 = vmatpush.bf16.msra.mxu0 %v384
    %473 = vmatpush.bf16.msra.mxu0 %v382
    %474 = vmatpush.bf16.msra.mxu0 %v380
    %475 = vmatpush.bf16.msra.mxu0 %v378
    %476 = vmatpush.bf16.msra.mxu0 %v376
    %477 = vmatpush.bf16.msra.mxu0 %v374
    %478 = vmatmul.bf16.gmra.mxu0 %v206
    %v479 = vpop.f32.mrf.mxu0
    %v480 = vadd.f32 0.0, %v479
    %v481 = vpop.f32.mrf.mxu0
    %v482 = vadd.f32 0.0, %v481
    %483 = vmatmul.bf16.gmra.mxu0 %v209
    %v484 = vpop.f32.mrf.mxu0
    %v485 = vadd.f32 0.0, %v484
    %v486 = vpop.f32.mrf.mxu0
    %v487 = vadd.f32 0.0, %v486
    %488 = vmatmul.bf16.gmra.mxu0 %v212
    %v489 = vpop.f32.mrf.mxu0
    %v490 = vadd.f32 0.0, %v489
    %v491 = vpop.f32.mrf.mxu0
    %v492 = vadd.f32 0.0, %v491
    %493 = vmatmul.bf16.gmra.mxu0 %v215
    %v494 = vpop.f32.mrf.mxu0
    %v495 = vadd.f32 0.0, %v494
    %v496 = vpop.f32.mrf.mxu0
    %v497 = vadd.f32 0.0, %v496
    %498 = vdwg.mxu0
    %499 = vmatpush.bf16.msra.mxu0 %v404
    %500 = vmatpush.bf16.msra.mxu0 %v402
    %501 = vmatpush.bf16.msra.mxu0 %v400
    %502 = vmatpush.bf16.msra.mxu0 %v398
    %503 = vmatpush.bf16.msra.mxu0 %v396
    %504 = vmatpush.bf16.msra.mxu0 %v394
    %505 = vmatpush.bf16.msra.mxu0 %v392
    %506 = vmatpush.bf16.msra.mxu0 %v390
    %507 = vmatmul.bf16.gmra.mxu0 %v207
    %v508 = vpop.f32.mrf.mxu0
    %v509 = vadd.f32 %v480, %v508
    %v510 = vpop.f32.mrf.mxu0
    %v511 = vadd.f32 %v482, %v510
    %512 = vmatmul.bf16.gmra.mxu0 %v210
    %v513 = vpop.f32.mrf.mxu0
    %v514 = vadd.f32 %v485, %v513
    %v515 = vpop.f32.mrf.mxu0
    %v516 = vadd.f32 %v487, %v515
    %517 = vmatmul.bf16.gmra.mxu0 %v213
    %v518 = vpop.f32.mrf.mxu0
    %v519 = vadd.f32 %v490, %v518
    %v520 = vpop.f32.mrf.mxu0
    %v521 = vadd.f32 %v492, %v520
    %522 = vmatmul.bf16.gmra.mxu0 %v216
    %v523 = vpop.f32.mrf.mxu0
    %v524 = vadd.f32 %v495, %v523
    %v525 = vpop.f32.mrf.mxu0
    %v526 = vadd.f32 %v497, %v525
    %527 = vdwg.mxu0
    %528 = vmatpush.bf16.msra.mxu0 %v420
    %529 = vmatpush.bf16.msra.mxu0 %v418
    %530 = vmatpush.bf16.msra.mxu0 %v416
    %531 = vmatpush.bf16.msra.mxu0 %v414
    %532 = vmatpush.bf16.msra.mxu0 %v412
    %533 = vmatpush.bf16.msra.mxu0 %v410
    %534 = vmatpush.bf16.msra.mxu0 %v408
    %535 = vmatpush.bf16.msra.mxu0 %v406
    %536 = vmatmul.bf16.gmra.mxu0 %v208
    %v537 = vpop.f32.mrf.mxu0
    %v538 = vadd.f32 %v509, %v537
    %v539 = vpop.f32.mrf.mxu0
    %v540 = vadd.f32 %v511, %v539
    %541 = vmatmul.bf16.gmra.mxu0 %v211
    %v542 = vpop.f32.mrf.mxu0
    %v543 = vadd.f32 %v514, %v542
    %v544 = vpop.f32.mrf.mxu0
    %v545 = vadd.f32 %v516, %v544
    %546 = vmatmul.bf16.gmra.mxu0 %v214
    %v547 = vpop.f32.mrf.mxu0
    %v548 = vadd.f32 %v519, %v547
    %v549 = vpop.f32.mrf.mxu0
    %v550 = vadd.f32 %v521, %v549
    %551 = vmatmul.bf16.gmra.mxu0 %v217
    %v552 = vpop.f32.mrf.mxu0
    %v553 = vadd.f32 %v524, %v552
    %v554 = vpop.f32.mrf.mxu0
    %v555 = vadd.f32 %v526, %v554
    %556 = vdwg.mxu0
    %557 = vmatpush.bf16.msra.mxu0 %v389
    %558 = vmatpush.bf16.msra.mxu0 %v387
    %559 = vmatpush.bf16.msra.mxu0 %v385
    %560 = vmatpush.bf16.msra.mxu0 %v383
    %561 = vmatpush.bf16.msra.mxu0 %v381
    %562 = vmatpush.bf16.msra.mxu0 %v379
    %563 = vmatpush.bf16.msra.mxu0 %v377
    %564 = vmatpush.bf16.msra.mxu0 %v375
    %565 = vmatmul.bf16.gmra.mxu0 %v206
    %v566 = vpop.f32.mrf.mxu0
    %v567 = vadd.f32 0.0, %v566
    %v568 = vpop.f32.mrf.mxu0
    %v569 = vadd.f32 0.0, %v568
    %570 = vmatmul.bf16.gmra.mxu0 %v209
    %v571 = vpop.f32.mrf.mxu0
    %v572 = vadd.f32 0.0, %v571
    %v573 = vpop.f32.mrf.mxu0
    %v574 = vadd.f32 0.0, %v573
    %575 = vmatmul.bf16.gmra.mxu0 %v212
    %v576 = vpop.f32.mrf.mxu0
    %v577 = vadd.f32 0.0, %v576
    %v578 = vpop.f32.mrf.mxu0
    %v579 = vadd.f32 0.0, %v578
    %580 = vmatmul.bf16.gmra.mxu0 %v215
    %v581 = vpop.f32.mrf.mxu0
    %v582 = vadd.f32 0.0, %v581
    %v583 = vpop.f32.mrf.mxu0
    %v584 = vadd.f32 0.0, %v583
    %585 = vdwg.mxu0
    %586 = vmatpush.bf16.msra.mxu0 %v405
    %587 = vmatpush.bf16.msra.mxu0 %v403
    %588 = vmatpush.bf16.msra.mxu0 %v401
    %589 = vmatpush.bf16.msra.mxu0 %v399
    %590 = vmatpush.bf16.msra.mxu0 %v397
    %591 = vmatpush.bf16.msra.mxu0 %v395
    %592 = vmatpush.bf16.msra.mxu0 %v393
    %593 = vmatpush.bf16.msra.mxu0 %v391
    %594 = vmatmul.bf16.gmra.mxu0 %v207
    %v595 = vpop.f32.mrf.mxu0
    %v596 = vadd.f32 %v567, %v595
    %v597 = vpop.f32.mrf.mxu0
    %v598 = vadd.f32 %v569, %v597
    %599 = vmatmul.bf16.gmra.mxu0 %v210
    %v600 = vpop.f32.mrf.mxu0
    %v601 = vadd.f32 %v572, %v600
    %v602 = vpop.f32.mrf.mxu0
    %v603 = vadd.f32 %v574, %v602
    %604 = vmatmul.bf16.gmra.mxu0 %v213
    %v605 = vpop.f32.mrf.mxu0
    %v606 = vadd.f32 %v577, %v605
    %v607 = vpop.f32.mrf.mxu0
    %v608 = vadd.f32 %v579, %v607
    %609 = vmatmul.bf16.gmra.mxu0 %v216
    %v610 = vpop.f32.mrf.mxu0
    %v611 = vadd.f32 %v582, %v610
    %v612 = vpop.f32.mrf.mxu0
    %v613 = vadd.f32 %v584, %v612
    %614 = vdwg.mxu0
    %615 = vmatpush.bf16.msra.mxu0 %v421
    %616 = vmatpush.bf16.msra.mxu0 %v419
    %617 = vmatpush.bf16.msra.mxu0 %v417
    %618 = vmatpush.bf16.msra.mxu0 %v415
    %619 = vmatpush.bf16.msra.mxu0 %v413
    %620 = vmatpush.bf16.msra.mxu0 %v411
    %621 = vmatpush.bf16.msra.mxu0 %v409
    %622 = vmatpush.bf16.msra.mxu0 %v407
    %623 = vmatmul.bf16.gmra.mxu0 %v208
    %v624 = vpop.f32.mrf.mxu0
    %v625 = vadd.f32 %v596, %v624
    %v626 = vpop.f32.mrf.mxu0
    %v627 = vadd.f32 %v598, %v626
    %628 = vmatmul.bf16.gmra.mxu0 %v211
    %v629 = vpop.f32.mrf.mxu0
    %v630 = vadd.f32 %v601, %v629
    %v631 = vpop.f32.mrf.mxu0
    %v632 = vadd.f32 %v603, %v631
    %633 = vmatmul.bf16.gmra.mxu0 %v214
    %v634 = vpop.f32.mrf.mxu0
    %v635 = vadd.f32 %v606, %v634
    %v636 = vpop.f32.mrf.mxu0
    %v637 = vadd.f32 %v608, %v636
    %638 = vmatmul.bf16.gmra.mxu0 %v217
    %v639 = vpop.f32.mrf.mxu0
    %v640 = vadd.f32 %v611, %v639
    %v641 = vpop.f32.mrf.mxu0
    %v642 = vadd.f32 %v613, %v641
    %643 = vdwg.mxu0
    %v644 = vadd.f32 %v86, %v538
    %v645 = vadd.f32 %v87, %v625
    %v646 = vadd.f32 %v88, %v540
    %v647 = vadd.f32 %v89, %v627
    %v648 = vadd.f32 %v90, %v543
    %v649 = vadd.f32 %v91, %v630
    %v650 = vadd.f32 %v92, %v545
    %v651 = vadd.f32 %v93, %v632
    %v652 = vadd.f32 %v94, %v548
    %v653 = vadd.f32 %v95, %v635
    %v654 = vadd.f32 %v96, %v550
    %v655 = vadd.f32 %v97, %v637
    %v656 = vadd.f32 %v98, %v553
    %v657 = vadd.f32 %v99, %v640
    %v658 = vadd.f32 %v100, %v555
    %v659 = vadd.f32 %v101, %v642
    %660 = vst [vmem:[#allocation8] sm:$0xff] %v644
    %661 = vst [vmem:[#allocation8 + $0x8] sm:$0xff] %v645
    %662 = vst [vmem:[#allocation8 + $0x10] sm:$0xff] %v646
    %663 = vst [vmem:[#allocation8 + $0x18] sm:$0xff] %v647
    %664 = vst [vmem:[#allocation8 + $0x20] sm:$0xff] %v648
    %665 = vst [vmem:[#allocation8 + $0x28] sm:$0xff] %v649
    %666 = vst [vmem:[#allocation8 + $0x30] sm:$0xff] %v650
    %667 = vst [vmem:[#allocation8 + $0x38] sm:$0xff] %v651
    %668 = vst [vmem:[#allocation8 + $0x40] sm:$0xff] %v652
    %669 = vst [vmem:[#allocation8 + $0x48] sm:$0xff] %v653
    %670 = vst [vmem:[#allocation8 + $0x50] sm:$0xff] %v654
    %671 = vst [vmem:[#allocation8 + $0x58] sm:$0xff] %v655
    %672 = vst [vmem:[#allocation8 + $0x60] sm:$0xff] %v656
    %673 = vst [vmem:[#allocation8 + $0x68] sm:$0xff] %v657
    %674 = vst [vmem:[#allocation8 + $0x70] sm:$0xff] %v658
    %675 = vst [vmem:[#allocation8 + $0x78] sm:$0xff] %v659
    // Predicated region
    $region30: #{tpu_custom_call.1} parent=1 // pred_check
      _
    $region31: #{tpu_custom_call.1} parent=1 // pred_check_branch
      %677 = sbr.rel (0) target = $region33
    $region32: #{tpu_custom_call.1} parent=1 // pred_region
      %679 = vsyncadd [#allocation4], 0
      %s680 = sshll.u32 [#allocation8], 4
      %s681 = int_to_ptr.vmem [resolvable:$true] %s680
      %s682 = sshll.u32 %s3, 4
      %s683 = int_to_ptr.hbm [resolvable:$true] %s682
      %688 = dma.vmem_to_hbm [thread:$0]  %s681, 2048, %s683, [#allocation4], 256, 256, 16
    $region33: #{tpu_custom_call.1} parent=1 // pred_fallthru
      _
    // Predicated region
    $region34: #{tpu_custom_call.1} parent=1 // pred_check
      _
    $region35: #{tpu_custom_call.1} parent=1 // pred_check_branch
      %690 = sbr.rel (0) target = $region37
    $region36: #{tpu_custom_call.1} parent=1 // pred_region
      %692 = dma.done [#allocation4], 2048
    $region37: #{tpu_custom_call.1} parent=1 // pred_fallthru
      _
    %693 = vsyncpa [#allocation3], 1
    %694 = vsyncpa [#allocation6], 1
    %695 = vsyncpa [#allocation4], 1

</llo_original>
